<compile_context>
chip_gen: v6e
topology: v6e:2x2x1
jax: 0.10.0
libtpu: 0.0.40
codegen_flags: <defaults>
</compile_context>

<pallas_src>
import math
import functools

import jax
import jax.numpy as jnp
from jax.experimental import pallas as pl
from jax.experimental.pallas import tpu as pltpu

_LANE = 128


def _round_up(x, m):
    return (x + m - 1) // m * m


@functools.lru_cache(maxsize=None)
def _vmem_limit_bytes():
    """Generation-aware scoped-VMEM limit (leaves headroom for Mosaic scratch)."""
    cap = 64 << 20
    try:
        cap = int(getattr(pltpu.get_tpu_info(), "vmem_capacity_bytes", cap))
    except Exception:
        pass
    # ~60% of physical VMEM, capped at 96 MiB: ~38 MiB on v7x, ~76 MiB on v5e/v6e.
    return int(min(cap * 0.6, 96 << 20))


def _tile_candidates(n_p, max_tile):
    """Multiples of 128 that divide the 128-padded node dim, descending."""
    hi = max(_LANE, min((max_tile // _LANE) * _LANE, n_p))
    cands = [t for t in range(hi, _LANE - 1, -_LANE) if n_p % t == 0]
    return cands or [_LANE]


def _phase1_tile(n_p, f_in_p, f_out_p, x_isz, sup_isz, w_isz, budget):
    """Row tile for x @ W -- footprint is tiny, so go big (fewer grid steps)."""
    for tm in _tile_candidates(n_p, 2048):
        fp = (2 * tm * f_in_p * x_isz          # x block (double-buffered)
              + 2 * tm * f_out_p * sup_isz     # support block (double-buffered)
              + 2 * f_in_p * f_out_p * w_isz)  # weight (constant index_map)
        if fp <= budget:
            return tm
    return _LANE


def _phase2_tiles(n_p, f_out_p, adj_isz, sup_isz, out_isz, budget, max_tile,
                  want_row_split):
    """(TM, TK, support_resident) for the adjacency matmul, sized to VMEM."""
    cands = _tile_candidates(n_p, max_tile)
    sup_resident_bytes = 2 * n_p * f_out_p * sup_isz   # double-buffered slab
    resident = sup_resident_bytes <= budget // 2

    def footprint(tm, tk):
        sup = sup_resident_bytes if resident else 2 * tk * f_out_p * sup_isz
        return (2 * tm * tk * adj_isz          # adj tiles (dominant stream)
                + sup
                + 2 * tm * f_out_p * out_isz   # output block
                + tm * f_out_p * 4)            # f32 accumulator scratch

    can_split = any(n_p // t >= 2 for t in cands)
    for tm in cands:
        # Keep >= 2 row tiles when B == 1 so both v7x TensorCores get work.
        if want_row_split and can_split and n_p // tm < 2:
            continue
        for tk in cands:
            if footprint(tm, tk) <= budget:
                return tm, tk, resident
    return _LANE, _LANE, False


# --------------------------- kernels -----------------------------------------


def _support_kernel(x_ref, w_ref, out_ref):
    # x_ref: (1, TM1, F_in_p)   w_ref: (F_in_p, F_out_p)   out_ref: (1, TM1, F_out_p)
    x = x_ref[0].astype(w_ref.dtype)   # cast to MXU operand dtype in-kernel
    out_ref[0] = jnp.dot(
        x, w_ref[...], preferred_element_type=jnp.float32
    ).astype(out_ref.dtype)


def _aggregate_resident_kernel(adj_ref, s_ref, b_ref, out_ref, acc_ref, *, tk):
    # adj_ref: (1, TM, TK) in its stored dtype (cast in-kernel, no host copy)
    # s_ref:   (1, N_p, F_out_p) -- whole per-batch support slab, resident in VMEM
    # b_ref:   (1, F_out_p) f32 (zeros when the layer has no bias)
    # out_ref: (1, TM, F_out_p)   acc_ref: (TM, F_out_p) f32
    k = pl.program_id(2)

    @pl.when(k == 0)
    def _():
        acc_ref[...] = jnp.zeros_like(acc_ref)

    start = pl.multiple_of(k * tk, _LANE)
    s_blk = s_ref[0, pl.ds(start, tk), :]
    acc_ref[...] += jnp.dot(
        adj_ref[0].astype(s_blk.dtype), s_blk, preferred_element_type=jnp.float32
    )

    @pl.when(k == pl.num_programs(2) - 1)
    def _():
        out_ref[0] = (acc_ref[...] + b_ref[...].astype(jnp.float32)
                      ).astype(out_ref.dtype)


def _aggregate_stream_kernel(adj_ref, s_ref, b_ref, out_ref, acc_ref):
    # Fallback when the support slab does not fit VMEM: stream (1, TK, F_out_p).
    k = pl.program_id(2)

    @pl.when(k == 0)
    def _():
        acc_ref[...] = jnp.zeros_like(acc_ref)

    s_blk = s_ref[0]
    acc_ref[...] += jnp.dot(
        adj_ref[0].astype(s_blk.dtype), s_blk, preferred_element_type=jnp.float32
    )

    @pl.when(k == pl.num_programs(2) - 1)
    def _():
        out_ref[0] = (acc_ref[...] + b_ref[...].astype(jnp.float32)
                      ).astype(out_ref.dtype)


# --------------------------- wrapper ------------------------------------------


@functools.partial(jax.jit, static_argnames=("compute_dtype", "max_tile"))
def graph_convolution(x, adj, weight, bias=None, *, compute_dtype=None,
                      max_tile=1024):
    """Pallas-backed GCN forward: adj @ (x @ weight) [+ bias].

    x: (B, N, F_in)   adj: (B, N, N)   weight: (F_in, F_out)
    bias: None, (F_out,), (1, F_out) or (1, 1, F_out)
    compute_dtype: explicit opt-in MXU operand dtype (e.g. jnp.bfloat16);
        accumulation and bias add stay f32; output keeps x.dtype.
        With None, nothing is downcast (operands use promote(x.dtype, adj.dtype)).
    """
    B, N, F_in = x.shape
    F_out = weight.shape[1]
    out_dtype = x.dtype

    if compute_dtype is not None:
        cdt = jnp.dtype(compute_dtype)
    else:
        cdt = jnp.promote_types(x.dtype, adj.dtype)

    f_in_p = _round_up(F_in, _LANE)
    f_out_p = _round_up(F_out, _LANE)
    n_p = _round_up(N, _LANE)             # lane-granular pad only, not tile-granular

    limit = _vmem_limit_bytes()
    budget = int(limit * 0.75)

    # Zero padding is a mathematical no-op. adj keeps its stored dtype: the
    # dominant HBM stream is never copied/cast on the host; per-tile casting
    # happens inside the kernel.
    x_in = x if (n_p == N and f_in_p == F_in) else jnp.pad(
        x, ((0, 0), (0, n_p - N), (0, f_in_p - F_in)))
    adj_in = adj if n_p == N else jnp.pad(
        adj, ((0, 0), (0, n_p - N), (0, n_p - N)))
    wp = jnp.pad(weight, ((0, f_in_p - F_in), (0, f_out_p - F_out))).astype(cdt)
    if bias is not None:
        bp = jnp.pad(bias.reshape(-1).astype(jnp.float32),
                     (0, f_out_p - F_out)).reshape(1, f_out_p)
    else:
        bp = jnp.zeros((1, f_out_p), jnp.float32)

    x_isz = jnp.dtype(x_in.dtype).itemsize
    adj_isz = jnp.dtype(adj_in.dtype).itemsize
    sup_isz = cdt.itemsize
    out_isz = jnp.dtype(out_dtype).itemsize

    # ---- phase 1: support = x @ W (once per batch/row-tile) ------------------
    tm1 = _phase1_tile(n_p, f_in_p, f_out_p, x_isz, sup_isz, sup_isz, budget)
    support = pl.pallas_call(
        _support_kernel,
        out_shape=jax.ShapeDtypeStruct((B, n_p, f_out_p), cdt),
        grid_spec=pltpu.PrefetchScalarGridSpec(
            num_scalar_prefetch=0,
            grid=(B, n_p // tm1),
            in_specs=[
                pl.BlockSpec((1, tm1, f_in_p), lambda b, i: (b, i, 0)),
                pl.BlockSpec((f_in_p, f_out_p), lambda b, i: (0, 0)),
            ],
            out_specs=pl.BlockSpec((1, tm1, f_out_p), lambda b, i: (b, i, 0)),
        ),
        compiler_params=pltpu.CompilerParams(
            dimension_semantics=("parallel", "parallel"),
            vmem_limit_bytes=limit,
        ),
        cost_estimate=pl.CostEstimate(
            flops=2 * B * n_p * f_in_p * f_out_p,
            transcendentals=0,
            bytes_accessed=(B * n_p * f_in_p * x_isz
                            + f_in_p * f_out_p * sup_isz
                            + B * n_p * f_out_p * sup_isz),
        ),
    )(x_in, wp)

    # ---- phase 2: out = adj @ support (+ bias), K-tiled f32 accumulator ------
    tm, tk, resident = _phase2_tiles(
        n_p, f_out_p, adj_isz, sup_isz, out_isz, budget, max_tile,
        want_row_split=(B == 1))
    n_row, n_k = n_p // tm, n_p // tk

    if resident:
        kernel = functools.partial(_aggregate_resident_kernel, tk=tk)
        support_spec = pl.BlockSpec((1, n_p, f_out_p), lambda b, i, k: (b, 0, 0))
        sup_bytes = B * n_p * f_out_p * sup_isz
    else:
        kernel = _aggregate_stream_kernel
        support_spec = pl.BlockSpec((1, tk, f_out_p), lambda b, i, k: (b, k, 0))
        sup_bytes = B * n_row * n_p * f_out_p * sup_isz

    out = pl.pallas_call(
        kernel,
        out_shape=jax.ShapeDtypeStruct((B, n_p, f_out_p), out_dtype),
        grid_spec=pltpu.PrefetchScalarGridSpec(
            num_scalar_prefetch=0,
            grid=(B, n_row, n_k),
            in_specs=[
                pl.BlockSpec((1, tm, tk), lambda b, i, k: (b, i, k)),   # adj
                support_spec,                                           # support
                pl.BlockSpec((1, f_out_p), lambda b, i, k: (0, 0)),     # bias
            ],
            out_specs=pl.BlockSpec((1, tm, f_out_p), lambda b, i, k: (b, i, 0)),
            scratch_shapes=[pltpu.VMEM((tm, f_out_p), jnp.float32)],
        ),
        compiler_params=pltpu.CompilerParams(
            dimension_semantics=("parallel", "parallel", "arbitrary"),
            vmem_limit_bytes=limit,
        ),
        cost_estimate=pl.CostEstimate(
            flops=2 * B * n_p * n_p * f_out_p,
            transcendentals=0,
            bytes_accessed=(B * n_p * n_p * adj_isz
                            + sup_bytes
                            + B * n_p * f_out_p * out_isz),
        ),
    )(adj_in, support, bp)

    if n_p != N or f_out_p != F_out:
        out = out[:, :N, :F_out]
    return out


def init_graph_convolution_params(key, in_features, out_features, bias=False):
    """Deterministic init matching the PyTorch module's reset_parameters()."""
    stdv = 1.0 / math.sqrt(out_features)
    kw, kb = jax.random.split(key)
    weight = jax.random.uniform(
        kw, (in_features, out_features), jnp.float32, minval=-stdv, maxval=stdv)
    b = None
    if bias:
        b = jax.random.uniform(
            kb, (1, 1, out_features), jnp.float32, minval=-stdv, maxval=stdv)
    return weight, b


if __name__ == "__main__":
    key = jax.random.PRNGKey(0)
    k_x, k_adj, k_p, k_x2, k_adj2, k_p2 = jax.random.split(key, 6)

    # ---- config 1: small module-scale demo, with bias -----------------------
    B, N, F_in, F_out = 2, 16, 32, 32
    x = jax.random.normal(k_x, (B, N, F_in), jnp.float32)
    adj = jax.random.uniform(k_adj, (B, N, N), jnp.float32)
    weight, bias = init_graph_convolution_params(k_p, F_in, F_out, bias=True)

    out = jax.block_until_ready(graph_convolution(x, adj, weight, bias))
    ref = jnp.einsum("bnm,bmf->bnf", adj,
                     jnp.einsum("bni,io->bno", x, weight)) + bias
    assert out.shape == (B, N, F_out)
    assert jnp.allclose(out, ref, atol=1e-3, rtol=1e-4), "f32 mismatch (config 1)"

    # bf16-operand opt-in (f32 accumulation); adjacency cast in-kernel only.
    out_bf = jax.block_until_ready(
        graph_convolution(x, adj, weight, bias, compute_dtype=jnp.bfloat16))
    sup_bf = jnp.einsum("bni,io->bno",
                        x.astype(jnp.bfloat16), weight.astype(jnp.bfloat16),
                        preferred_element_type=jnp.float32).astype(jnp.bfloat16)
    ref_bf = jnp.einsum("bnm,bmf->bnf", adj.astype(jnp.bfloat16), sup_bf,
                        preferred_element_type=jnp.float32) + bias
    assert jnp.allclose(out_bf, ref_bf, atol=5e-2, rtol=5e-2), "bf16 mismatch"

    # ---- config 2: no bias, N=200 (128-padding), forced 128 tiles ->
    #      2 row tiles x 2 K tiles exercising the resident-support pl.ds path --
    B2, N2, Fi2, Fo2 = 1, 200, 48, 96
    x2 = jax.random.normal(k_x2, (B2, N2, Fi2), jnp.float32)
    adj2 = jax.random.uniform(k_adj2, (B2, N2, N2), jnp.float32)
    w2, _ = init_graph_convolution_params(k_p2, Fi2, Fo2, bias=False)

    out2 = jax.block_until_ready(
        graph_convolution(x2, adj2, w2, None, max_tile=128))
    ref2 = jnp.einsum("bnm,bmf->bnf", adj2, jnp.einsum("bni,io->bno", x2, w2))
    assert out2.shape == (B2, N2, Fo2)
    assert jnp.allclose(out2, ref2, atol=1e-2, rtol=1e-4), "f32 mismatch (config 2)"

    print("KERNEL_OK")
</pallas_src>

<mosaic_0001>
module attributes {stable_mosaic.version = 11 : i64} {
  func.func @_support_kernel(%arg0: i32, %arg1: i32, %arg2: memref<1x128x128xf32, #tpu.memory_space<vmem>>, %arg3: memref<128x128xf32, #tpu.memory_space<vmem>>, %arg4: memref<1x128x128xf32, #tpu.memory_space<vmem>>) attributes {dimension_semantics = [#tpu.dimension_semantics<parallel>, #tpu.dimension_semantics<parallel>], iteration_bounds = array<i64: 2, 1>, scalar_prefetch = 0 : i64, scratch_operands = 0 : i64, tpu.core_type = #tpu.core_type<tc>, window_params = [{transform_indices = @transform_0, window_bounds = array<i64: 1, 128, 128>}, {pipeline_mode = #tpu.pipeline_mode<synchronous>, transform_indices = @transform_1, window_bounds = array<i64: 128, 128>}, {transform_indices = @transform_2, window_bounds = array<i64: 1, 128, 128>}]} {
    %c0 = arith.constant 0 : index
    %c0_0 = arith.constant 0 : index
    %c0_1 = arith.constant 0 : index
    %0 = vector.load %arg2[%c0, %c0_0, %c0_1] : memref<1x128x128xf32, #tpu.memory_space<vmem>>, vector<1x128x128xf32>
    %1 = vector.shape_cast %0 : vector<1x128x128xf32> to vector<128x128xf32>
    %c0_2 = arith.constant 0 : index
    %c0_3 = arith.constant 0 : index
    %2 = vector.load %arg3[%c0_2, %c0_3] : memref<128x128xf32, #tpu.memory_space<vmem>>, vector<128x128xf32>
    %cst = arith.constant dense<0.000000e+00> : vector<128x128xf32>
    %3 = tpu.matmul %1, %2, %cst {dimension_numbers = #tpu.dot_dimension_numbers<[1], [0], [0], [1], [0, 0, 1, 1], [], []>} : vector<128x128xf32>, vector<128x128xf32>, vector<128x128xf32> -> vector<128x128xf32>
    %c0_4 = arith.constant 0 : index
    %c0_5 = arith.constant 0 : index
    %c0_6 = arith.constant 0 : index
    %4 = vector.load %arg4[%c0_4, %c0_5, %c0_6] : memref<1x128x128xf32, #tpu.memory_space<vmem>>, vector<1x128x128xf32>
    %5 = vector.shape_cast %4 : vector<1x128x128xf32> to vector<128x128xf32>
    %6 = vector.shape_cast %3 : vector<128x128xf32> to vector<1x128x128xf32>
    tpu.vector_store %arg4[%c0_4, %c0_5, %c0_6], %6 {strides = array<i32>} : memref<1x128x128xf32, #tpu.memory_space<vmem>>, vector<1x128x128xf32>,
    return
  }
  func.func @transform_0(%arg0: i32, %arg1: i32) -> (i32, i32, i32) {
    %c0_i32 = arith.constant 0 : i32
    %c0_i32_0 = arith.constant 0 : i32
    return %arg0, %arg1, %c0_i32 : i32, i32, i32
  }
  func.func @transform_1(%arg0: i32, %arg1: i32) -> (i32, i32) {
    %c0_i32 = arith.constant 0 : i32
    %c0_i32_0 = arith.constant 0 : i32
    %c0_i32_1 = arith.constant 0 : i32
    return %c0_i32, %c0_i32_0 : i32, i32
  }
  func.func @transform_2(%arg0: i32, %arg1: i32) -> (i32, i32, i32) {
    %c0_i32 = arith.constant 0 : i32
    %c0_i32_0 = arith.constant 0 : i32
    return %arg0, %arg1, %c0_i32 : i32, i32, i32
  }
}

module attributes {stable_mosaic.version = 11 : i64} {
  func.func @_aggregate_resident_kernel(%arg0: i32, %arg1: i32, %arg2: i32, %arg3: memref<1x128x128xf32, #tpu.memory_space<vmem>>, %arg4: memref<1x128x128xf32, #tpu.memory_space<vmem>>, %arg5: memref<1x128xf32, #tpu.memory_space<vmem>>, %arg6: memref<1x128x128xf32, #tpu.memory_space<vmem>>, %arg7: memref<128x128xf32, #tpu.memory_space<vmem>>) attributes {dimension_semantics = [#tpu.dimension_semantics<parallel>, #tpu.dimension_semantics<parallel>, #tpu.dimension_semantics<arbitrary>], iteration_bounds = array<i64: 2, 1, 1>, scalar_prefetch = 0 : i64, scratch_operands = 1 : i64, tpu.core_type = #tpu.core_type<tc>, window_params = [{transform_indices = @transform_0, window_bounds = array<i64: 1, 128, 128>}, {transform_indices = @transform_1, window_bounds = array<i64: 1, 128, 128>}, {pipeline_mode = #tpu.pipeline_mode<synchronous>, transform_indices = @transform_2, window_bounds = array<i64: 1, 128>}, {transform_indices = @transform_3, window_bounds = array<i64: 1, 128, 128>}]} {
    %c0_i32 = arith.constant 0 : i32
    %0 = arith.cmpi eq, %arg2, %c0_i32 : i32
    %1 = arith.extui %0 : i1 to i32
    %c0_i32_0 = arith.constant 0 : i32
    %2 = arith.cmpi ne, %1, %c0_i32_0 : i32
    scf.if %2 {
      %cst_11 = arith.constant 0.000000e+00 : f32
      %17 = vector.broadcast %cst_11 : f32 to vector<128x128xf32>
      %c0_12 = arith.constant 0 : index
      %c0_13 = arith.constant 0 : index
      %18 = vector.load %arg7[%c0_12, %c0_13] : memref<128x128xf32, #tpu.memory_space<vmem>>, vector<128x128xf32>
      tpu.vector_store %arg7[%c0_12, %c0_13], %17 {strides = array<i32>} : memref<128x128xf32, #tpu.memory_space<vmem>>, vector<128x128xf32>,
    } else {
    }
    %c128_i32 = arith.constant 128 : i32
    %3 = arith.muli %arg2, %c128_i32 : i32
    %4 = tpu.assume_multiple %3, 128 : i32
    %c0 = arith.constant 0 : index
    %5 = arith.index_cast %4 : i32 to index
    %c0_1 = arith.constant 0 : index
    %6 = vector.load %arg4[%c0, %5, %c0_1] : memref<1x128x128xf32, #tpu.memory_space<vmem>>, vector<1x128x128xf32>
    %7 = vector.shape_cast %6 : vector<1x128x128xf32> to vector<128x128xf32>
    %c0_2 = arith.constant 0 : index
    %c0_3 = arith.constant 0 : index
    %8 = vector.load %arg7[%c0_2, %c0_3] : memref<128x128xf32, #tpu.memory_space<vmem>>, vector<128x128xf32>
    %c0_4 = arith.constant 0 : index
    %c0_5 = arith.constant 0 : index
    %c0_6 = arith.constant 0 : index
    %9 = vector.load %arg3[%c0_4, %c0_5, %c0_6] : memref<1x128x128xf32, #tpu.memory_space<vmem>>, vector<1x128x128xf32>
    %10 = vector.shape_cast %9 : vector<1x128x128xf32> to vector<128x128xf32>
    %cst = arith.constant dense<0.000000e+00> : vector<128x128xf32>
    %11 = tpu.matmul %10, %7, %cst {dimension_numbers = #tpu.dot_dimension_numbers<[1], [0], [0], [1], [0, 0, 1, 1], [], []>} : vector<128x128xf32>, vector<128x128xf32>, vector<128x128xf32> -> vector<128x128xf32>
    %12 = arith.addf %8, %11 : vector<128x128xf32>
    %c0_7 = arith.constant 0 : index
    %c0_8 = arith.constant 0 : index
    %13 = vector.load %arg7[%c0_7, %c0_8] : memref<128x128xf32, #tpu.memory_space<vmem>>, vector<128x128xf32>
    tpu.vector_store %arg7[%c0_7, %c0_8], %12 {strides = array<i32>} : memref<128x128xf32, #tpu.memory_space<vmem>>, vector<128x128xf32>,
    %c0_i32_9 = arith.constant 0 : i32
    %14 = arith.cmpi eq, %arg2, %c0_i32_9 : i32
    %15 = arith.extui %14 : i1 to i32
    %c0_i32_10 = arith.constant 0 : i32
    %16 = arith.cmpi ne, %15, %c0_i32_10 : i32
    scf.if %16 {
      %c0_11 = arith.constant 0 : index
      %c0_12 = arith.constant 0 : index
      %17 = vector.load %arg7[%c0_11, %c0_12] : memref<128x128xf32, #tpu.memory_space<vmem>>, vector<128x128xf32>
      %c0_13 = arith.constant 0 : index
      %c0_14 = arith.constant 0 : index
      %18 = vector.load %arg5[%c0_13, %c0_14] : memref<1x128xf32, #tpu.memory_space<vmem>>, vector<1x128xf32>
      %19 = vector.broadcast %18 : vector<1x128xf32> to vector<128x128xf32>
      %20 = arith.addf %17, %19 : vector<128x128xf32>
      %c0_15 = arith.constant 0 : index
      %c0_16 = arith.constant 0 : index
      %c0_17 = arith.constant 0 : index
      %21 = vector.load %arg6[%c0_15, %c0_16, %c0_17] : memref<1x128x128xf32, #tpu.memory_space<vmem>>, vector<1x128x128xf32>
      %22 = vector.shape_cast %21 : vector<1x128x128xf32> to vector<128x128xf32>
      %23 = vector.shape_cast %20 : vector<128x128xf32> to vector<1x128x128xf32>
      tpu.vector_store %arg6[%c0_15, %c0_16, %c0_17], %23 {strides = array<i32>} : memref<1x128x128xf32, #tpu.memory_space<vmem>>, vector<1x128x128xf32>,
    } else {
    }
    return
  }
  func.func @transform_0(%arg0: i32, %arg1: i32, %arg2: i32) -> (i32, i32, i32) {
    %c0_i32 = arith.constant 0 : i32
    return %arg0, %arg1, %arg2 : i32, i32, i32
  }
  func.func @transform_1(%arg0: i32, %arg1: i32, %arg2: i32) -> (i32, i32, i32) {
    %c0_i32 = arith.constant 0 : i32
    %c0_i32_0 = arith.constant 0 : i32
    %c0_i32_1 = arith.constant 0 : i32
    return %arg0, %c0_i32, %c0_i32_0 : i32, i32, i32
  }
  func.func @transform_2(%arg0: i32, %arg1: i32, %arg2: i32) -> (i32, i32) {
    %c0_i32 = arith.constant 0 : i32
    %c0_i32_0 = arith.constant 0 : i32
    %c0_i32_1 = arith.constant 0 : i32
    return %c0_i32, %c0_i32_0 : i32, i32
  }
  func.func @transform_3(%arg0: i32, %arg1: i32, %arg2: i32) -> (i32, i32, i32) {
    %c0_i32 = arith.constant 0 : i32
    %c0_i32_0 = arith.constant 0 : i32
    return %arg0, %arg1, %c0_i32 : i32, i32, i32
  }
}

</mosaic_0001>

<llo_original>
// kernel: graph_convolution.2
$region0: #{graph_convolution.2}
  #allocation0 [shape = 'u32[]', space=smem, size = 0x4, offset = 0x4, fixed_abs, tag = 'smem constant byte address 0x4 - core index']
  #allocation1 [shape = 'u32[144,128]{1,0:T(1,128)}', space=vmem, size = 0x12000, scoped, tag = 'internal scratch']
  %s0 = inlined_call_operand.vmem [shape: f32[2,128,128], index: 0, kind: input, shape index: {}]
  %s1 = inlined_call_operand.vmem [shape: f32[128,128], index: 1, kind: input, shape index: {}]
  %s2 = inlined_call_operand.vmem [shape: f32[2,128,128], index: 2, kind: output, shape index: {}]
  %s3 = sld [smem:[#allocation0]]
  $region41: #{graph_convolution.2} parent=0
    _
  %s5 = ssub.s32 1, %s3
  %s6 = scalar_select 0, %s5, %s3
  loop: start=0, step=1, limit=4
  $region2: #{graph_convolution.2} parent=0 // loop_pre_header
    _
  $region3: #{graph_convolution.2} parent=0 // loop_header
    %s8 = sphi 0, %s12
    %p9 = scmp.ge.s32.totalorder %s8, 4
    %s15 = sphi 0, %s27
    %s16 = sphi 0, %s23
    %s17 = sphi 0, %s15
    %s18 = sphi 0, %s16
    %s19 = sphi 0, %s17
    %s20 = sphi 0, %s18
    %s32 = sphi 0, %s34
    %s35 = sphi 0, %s32
    %s36 = sphi 0, %s35
    %s52 = sphi 0, %s36
    %s56 = sphi 0, %s56
    %s58 = sphi 0, %s56
    %s59 = sphi 0, %s58
    %s73 = sphi 0, %s59
    %s81 = sphi 0, %s83
    %s84 = sphi 0, %s81
    %s85 = sphi 0, %s84
    %s101 = sphi 0, %s85
  $region4: #{graph_convolution.2} parent=0 // loop_header_branch
    %11 = sbr.rel (%p9) target = $region8
  $region5: #{graph_convolution.2} parent=0 // loop_body
    %s13 = ssub.s32 %s8, 1
    %s14 = ssub.s32 %s8, 2
    %s21 = sadd.s32 1, %s16
    %p22 = scmp.ge.s32.totalorder %s21, 1
    %s23 = scalar_select %p22, 0, %s21
    %s24 = sadd.s32 1, %s15
    %s25 = scalar_select %p22, %s24, %s15
    %p26 = scmp.ge.s32.totalorder %s25, 2
    %s27 = scalar_select %p26, 0, %s25
    %s28 = ssub.s32 %s15, %s27
    %s29 = ssub.s32 %s16, %s23
    %s30 = sor.u32 %s28, %s29
    %p31 = scmp.eq.s32.totalorder %s30, 0
    %s33 = sadd.s32 %s32, 1
    %s34 = scalar_select %p31, %s32, %s33
    %p37 = pneg %p31
    %p38 = scmp.eq.s32.totalorder %s8, 1
    %p39 = por %p37, %p38
    %p40 = scmp.ne.s32.totalorder %s32, %s35
    %p41 = scmp.eq.s32.totalorder %s8, 0
    %p42 = por %p40, %p41
    %p43 = scmp.ne.s32.totalorder %s32, %s35
    %p44 = scmp.eq.s32.totalorder %s13, 1
    %p45 = por %p43, %p44
    %p46 = scmp.ne.s32.totalorder %s35, %s36
    %p47 = scmp.eq.s32.totalorder %s13, 0
    %p48 = por %p46, %p47
    %p49 = scmp.ne.s32.totalorder %s35, %s36
    %p50 = scmp.eq.s32.totalorder %s14, 1
    %p51 = por %p49, %p50
    %p53 = scmp.ne.s32.totalorder %s36, %s52
    %p54 = scmp.eq.s32.totalorder %s14, 0
    %p55 = por %p53, %p54
    %s57 = sadd.s32 %s56, 1
    %p60 = scmp.eq.s32.totalorder %s8, 1
    %p61 = scmp.ne.s32.totalorder %s56, %s58
    %p62 = scmp.eq.s32.totalorder %s8, 0
    %p63 = por %p61, %p62
    %p64 = scmp.ne.s32.totalorder %s56, %s58
    %p65 = scmp.eq.s32.totalorder %s13, 1
    %p66 = por %p64, %p65
    %p67 = scmp.ne.s32.totalorder %s58, %s59
    %p68 = scmp.eq.s32.totalorder %s13, 0
    %p69 = por %p67, %p68
    %p70 = scmp.ne.s32.totalorder %s58, %s59
    %p71 = scmp.eq.s32.totalorder %s14, 1
    %p72 = por %p70, %p71
    %p74 = scmp.ne.s32.totalorder %s59, %s73
    %p75 = scmp.eq.s32.totalorder %s14, 0
    %p76 = por %p74, %p75
    %s77 = ssub.s32 %s15, %s27
    %s78 = ssub.s32 %s16, %s23
    %s79 = sor.u32 %s77, %s78
    %p80 = scmp.eq.s32.totalorder %s79, 0
    %s82 = sadd.s32 %s81, 1
    %s83 = scalar_select %p80, %s81, %s82
    %p86 = pneg %p80
    %p87 = scmp.eq.s32.totalorder %s8, 1
    %p88 = por %p86, %p87
    %p89 = scmp.ne.s32.totalorder %s81, %s84
    %p90 = scmp.eq.s32.totalorder %s8, 0
    %p91 = por %p89, %p90
    %p92 = scmp.ne.s32.totalorder %s81, %s84
    %p93 = scmp.eq.s32.totalorder %s13, 1
    %p94 = por %p92, %p93
    %p95 = scmp.ne.s32.totalorder %s84, %s85
    %p96 = scmp.eq.s32.totalorder %s13, 0
    %p97 = por %p95, %p96
    %p98 = scmp.ne.s32.totalorder %s84, %s85
    %p99 = scmp.eq.s32.totalorder %s14, 1
    %p100 = por %p98, %p99
    %p102 = scmp.ne.s32.totalorder %s85, %s101
    %p103 = scmp.eq.s32.totalorder %s14, 0
    %p104 = por %p102, %p103
    %p105 = scmp.le.s32.totalorder 1, %s8
    %p106 = scmp.lt.s32.totalorder %s8, 3
    %p107 = pnand %p105, %p106
    %p108 = pneg %p107
    // Predicated region
    $region9: #{graph_convolution.2} parent=5 // pred_check
      _
    $region10: #{graph_convolution.2} parent=5 // pred_check_branch
      %110 = sbr.rel (%p107) target = $region12
    $region11: #{graph_convolution.2} parent=5 // pred_region
      %s111 = ssub.s32 %s8, 1
      // Predicated region
      $region13: #{graph_convolution.2} parent=11 // pred_check
        %p112 = pneg %p69
      $region14: #{graph_convolution.2} parent=11 // pred_check_branch
        %114 = sbr.rel (%p112) target = $region16
      $region15: #{graph_convolution.2} parent=11 // pred_region
        _
      $region16: #{graph_convolution.2} parent=11 // pred_fallthru
        _
    $region12: #{graph_convolution.2} parent=5 // pred_fallthru
      _
    %p115 = scmp.lt.s32.totalorder %s8, 2
    // Predicated region
    $region17: #{graph_convolution.2} parent=5 // pred_check
      %p116 = pneg %p115
    $region18: #{graph_convolution.2} parent=5 // pred_check_branch
      %118 = sbr.rel (%p116) target = $region20
    $region19: #{graph_convolution.2} parent=5 // pred_region
      // Predicated region
      $region21: #{graph_convolution.2} parent=19 // pred_check
        %p119 = pneg %p42
      $region22: #{graph_convolution.2} parent=19 // pred_check_branch
        %121 = sbr.rel (%p119) target = $region24
      $region23: #{graph_convolution.2} parent=19 // pred_region
        %s122 = smul.u32 16, %s16
        %p123 = scmp.lt.s32.totalorder %s15, 1
        %s124 = scalar_select %p123, %s15, 1
        %p125 = scmp.lt.s32.totalorder %s122, 15
        %s126 = scalar_select %p125, %s122, 15
        %s127 = smul.addr %s124, 16
        %s128 = sadd.s32 %s126, %s127
        %s129 = smul.addr %s128, 8
        %s130 = scalar_lea.vmem %s0, %s129
        %s131 = smul.u32 16, %s16
      $region24: #{graph_convolution.2} parent=19 // pred_fallthru
        _
    $region20: #{graph_convolution.2} parent=5 // pred_fallthru
      _
    %p132 = scmp.le.s32.totalorder 1, %s8
    %p133 = scmp.lt.s32.totalorder %s8, 3
    %p134 = pnand %p132, %p133
    %p135 = pneg %p134
    // Predicated region
    $region25: #{graph_convolution.2} parent=5 // pred_check
      _
    $region26: #{graph_convolution.2} parent=5 // pred_check_branch
      %137 = sbr.rel (%p134) target = $region28
    $region27: #{graph_convolution.2} parent=5 // pred_region
      %s138 = ssub.s32 %s8, 1
      %s139 = smul.u32 16, %s18
      %p140 = scmp.lt.s32.totalorder %s17, 1
      %s141 = scalar_select %p140, %s17, 1
      %p142 = scmp.lt.s32.totalorder %s139, 15
      %s143 = scalar_select %p142, %s139, 15
      %s144 = smul.addr %s141, 16
      %s145 = sadd.s32 %s143, %s144
      %s146 = smul.addr %s145, 8
      %s147 = scalar_lea.vmem %s0, %s146
      %p148 = pneg %p48
      %p149 = pneg %p45
      %p150 = pneg %p69
      %p151 = pneg %p66
      %p152 = pneg %p97
      %p153 = pneg %p94
      %s154 = smul.u32 16, %s18
      %p155 = scmp.lt.s32.totalorder %s17, 1
      %s156 = scalar_select %p155, %s17, 1
      %p157 = scmp.lt.s32.totalorder %s154, 15
      %s158 = scalar_select %p157, %s154, 15
      %s159 = smul.addr %s156, 16
      %s160 = sadd.s32 %s158, %s159
      %s161 = smul.addr %s160, 8
      %s162 = scalar_lea.vmem %s2, %s161
      %s163 = smul.u32 16, %s18
      %p164 = scmp.lt.s32.totalorder %s17, 1
      %s165 = scalar_select %p164, %s17, 1
      %p166 = scmp.lt.s32.totalorder %s163, 15
      %s167 = scalar_select %p166, %s163, 15
      %s168 = smul.addr %s165, 16
      %s169 = sadd.s32 %s167, %s168
      %s170 = smul.addr %s169, 8
      %s171 = scalar_lea.vmem %s0, %s170
      %s172 = smul.u32 16, %s18
      %s173 = smul.u32 16, %s18
      %p174 = scmp.lt.s32.totalorder %s17, 1
      %s175 = scalar_select %p174, %s17, 1
      %p176 = scmp.lt.s32.totalorder %s173, 15
      %s177 = scalar_select %p176, %s173, 15
      %s178 = smul.addr %s175, 16
      %s179 = sadd.s32 %s177, %s178
      %s180 = smul.addr %s179, 8
      %s181 = scalar_lea.vmem %s2, %s180
      %s182 = smul.u32 16, %s18
      %v183 = vld [vmem:[%s171] sm:$0xff]
      %v184 = vld [vmem:[%s171 + $0x8] sm:$0xff]
      %v185 = vld [vmem:[%s171 + $0x10] sm:$0xff]
      %v186 = vld [vmem:[%s171 + $0x18] sm:$0xff]
      %v187 = vld [vmem:[%s171 + $0x20] sm:$0xff]
      %v188 = vld [vmem:[%s171 + $0x28] sm:$0xff]
      %v189 = vld [vmem:[%s171 + $0x30] sm:$0xff]
      %v190 = vld [vmem:[%s171 + $0x38] sm:$0xff]
      %v191 = vld [vmem:[%s171 + $0x40] sm:$0xff]
      %v192 = vld [vmem:[%s171 + $0x48] sm:$0xff]
      %v193 = vld [vmem:[%s171 + $0x50] sm:$0xff]
      %v194 = vld [vmem:[%s171 + $0x58] sm:$0xff]
      %v195 = vld [vmem:[%s171 + $0x60] sm:$0xff]
      %v196 = vld [vmem:[%s171 + $0x68] sm:$0xff]
      %v197 = vld [vmem:[%s171 + $0x70] sm:$0xff]
      %v198 = vld [vmem:[%s171 + $0x78] sm:$0xff]
      %v199 = vld [vmem:[%s1] sm:$0xff]
      %v200 = vld [vmem:[%s1 + $0x8] sm:$0xff]
      %v201 = vld [vmem:[%s1 + $0x10] sm:$0xff]
      %v202 = vld [vmem:[%s1 + $0x18] sm:$0xff]
      %v203 = vld [vmem:[%s1 + $0x20] sm:$0xff]
      %v204 = vld [vmem:[%s1 + $0x28] sm:$0xff]
      %v205 = vld [vmem:[%s1 + $0x30] sm:$0xff]
      %v206 = vld [vmem:[%s1 + $0x38] sm:$0xff]
      %v207 = vld [vmem:[%s1 + $0x40] sm:$0xff]
      %v208 = vld [vmem:[%s1 + $0x48] sm:$0xff]
      %v209 = vld [vmem:[%s1 + $0x50] sm:$0xff]
      %v210 = vld [vmem:[%s1 + $0x58] sm:$0xff]
      %v211 = vld [vmem:[%s1 + $0x60] sm:$0xff]
      %v212 = vld [vmem:[%s1 + $0x68] sm:$0xff]
      %v213 = vld [vmem:[%s1 + $0x70] sm:$0xff]
      %v214 = vld [vmem:[%s1 + $0x78] sm:$0xff]
      %215 = vmatprep.subr.mxu0 0.0
      %216 = vmatpush1.msra.mxu0 %v214
      %217 = vmatprep.subr.mxu0 0.0
      %218 = vmatpush1.msra.mxu0 %v213
      %219 = vmatprep.subr.mxu0 0.0
      %220 = vmatpush1.msra.mxu0 %v212
      %221 = vmatprep.subr.mxu0 0.0
      %222 = vmatpush1.msra.mxu0 %v211
      %223 = vmatprep.subr.mxu0 0.0
      %224 = vmatpush1.msra.mxu0 %v210
      %225 = vmatprep.subr.mxu0 0.0
      %226 = vmatpush1.msra.mxu0 %v209
      %227 = vmatprep.subr.mxu0 0.0
      %228 = vmatpush1.msra.mxu0 %v208
      %229 = vmatprep.subr.mxu0 0.0
      %230 = vmatpush1.msra.mxu0 %v207
      %231 = vmatprep.subr.mxu0 0.0
      %232 = vmatpush1.msra.mxu0 %v206
      %233 = vmatprep.subr.mxu0 0.0
      %234 = vmatpush1.msra.mxu0 %v205
      %235 = vmatprep.subr.mxu0 0.0
      %236 = vmatpush1.msra.mxu0 %v204
      %237 = vmatprep.subr.mxu0 0.0
      %238 = vmatpush1.msra.mxu0 %v203
      %239 = vmatprep.subr.mxu0 0.0
      %240 = vmatpush1.msra.mxu0 %v202
      %241 = vmatprep.subr.mxu0 0.0
      %242 = vmatpush1.msra.mxu0 %v201
      %243 = vmatprep.subr.mxu0 0.0
      %244 = vmatpush1.msra.mxu0 %v200
      %245 = vmatprep.subr.mxu0 0.0
      %246 = vmatpush1.msra.mxu0 %v199
      %247 = vmatprep.subr.mxu0 0.0
      %248 = vmatpush2.msra.mxu0 0.0
      %249 = vmatprep.subr.mxu0 0.0
      %250 = vmatpush2.msra.mxu0 0.0
      %251 = vmatprep.subr.mxu0 0.0
      %252 = vmatpush2.msra.mxu0 0.0
      %253 = vmatprep.subr.mxu0 0.0
      %254 = vmatpush2.msra.mxu0 0.0
      %255 = vmatprep.subr.mxu0 0.0
      %256 = vmatpush2.msra.mxu0 0.0
      %257 = vmatprep.subr.mxu0 0.0
      %258 = vmatpush2.msra.mxu0 0.0
      %259 = vmatprep.subr.mxu0 0.0
      %260 = vmatpush2.msra.mxu0 0.0
      %261 = vmatprep.subr.mxu0 0.0
      %262 = vmatpush2.msra.mxu0 0.0
      %263 = vmatprep.subr.mxu0 0.0
      %264 = vmatpush2.msra.mxu0 0.0
      %265 = vmatprep.subr.mxu0 0.0
      %266 = vmatpush2.msra.mxu0 0.0
      %267 = vmatprep.subr.mxu0 0.0
      %268 = vmatpush2.msra.mxu0 0.0
      %269 = vmatprep.subr.mxu0 0.0
      %270 = vmatpush2.msra.mxu0 0.0
      %271 = vmatprep.subr.mxu0 0.0
      %272 = vmatpush2.msra.mxu0 0.0
      %273 = vmatprep.subr.mxu0 0.0
      %274 = vmatpush2.msra.mxu0 0.0
      %275 = vmatprep.subr.mxu0 0.0
      %276 = vmatpush2.msra.mxu0 0.0
      %277 = vmatprep.subr.mxu0 0.0
      %278 = vmatpush2.msra.mxu0 0.0
      %279 = vmatprep.mubr.f32.mxu0 0.0
      %280 = vmatmul.mubr.f32.gmra.mxu0 %v183
      %v281 = vpop.f32.mrf.mxu0
      %v282 = vadd.f32 0.0, %v281
      %v283 = vpop.f32.mrf.mxu0
      %284 = vmatprep.mubr.f32.mxu0 0.0
      %285 = vmatmul.mubr.f32.gmra.mxu0 %v184
      %v286 = vpop.f32.mrf.mxu0
      %v287 = vadd.f32 0.0, %v286
      %v288 = vpop.f32.mrf.mxu0
      %289 = vmatprep.mubr.f32.mxu0 0.0
      %290 = vmatmul.mubr.f32.gmra.mxu0 %v185
      %v291 = vpop.f32.mrf.mxu0
      %v292 = vadd.f32 0.0, %v291
      %v293 = vpop.f32.mrf.mxu0
      %294 = vmatprep.mubr.f32.mxu0 0.0
      %295 = vmatmul.mubr.f32.gmra.mxu0 %v186
      %v296 = vpop.f32.mrf.mxu0
      %v297 = vadd.f32 0.0, %v296
      %v298 = vpop.f32.mrf.mxu0
      %299 = vmatprep.mubr.f32.mxu0 0.0
      %300 = vmatmul.mubr.f32.gmra.mxu0 %v187
      %v301 = vpop.f32.mrf.mxu0
      %v302 = vadd.f32 0.0, %v301
      %v303 = vpop.f32.mrf.mxu0
      %304 = vmatprep.mubr.f32.mxu0 0.0
      %305 = vmatmul.mubr.f32.gmra.mxu0 %v188
      %v306 = vpop.f32.mrf.mxu0
      %v307 = vadd.f32 0.0, %v306
      %v308 = vpop.f32.mrf.mxu0
      %309 = vmatprep.mubr.f32.mxu0 0.0
      %310 = vmatmul.mubr.f32.gmra.mxu0 %v189
      %v311 = vpop.f32.mrf.mxu0
      %v312 = vadd.f32 0.0, %v311
      %v313 = vpop.f32.mrf.mxu0
      %314 = vmatprep.mubr.f32.mxu0 0.0
      %315 = vmatmul.mubr.f32.gmra.mxu0 %v190
      %v316 = vpop.f32.mrf.mxu0
      %v317 = vadd.f32 0.0, %v316
      %v318 = vpop.f32.mrf.mxu0
      %319 = vmatprep.mubr.f32.mxu0 0.0
      %320 = vmatmul.mubr.f32.gmra.mxu0 %v191
      %v321 = vpop.f32.mrf.mxu0
      %v322 = vadd.f32 0.0, %v321
      %v323 = vpop.f32.mrf.mxu0
      %324 = vmatprep.mubr.f32.mxu0 0.0
      %325 = vmatmul.mubr.f32.gmra.mxu0 %v192
      %v326 = vpop.f32.mrf.mxu0
      %v327 = vadd.f32 0.0, %v326
      %v328 = vpop.f32.mrf.mxu0
      %329 = vmatprep.mubr.f32.mxu0 0.0
      %330 = vmatmul.mubr.f32.gmra.mxu0 %v193
      %v331 = vpop.f32.mrf.mxu0
      %v332 = vadd.f32 0.0, %v331
      %v333 = vpop.f32.mrf.mxu0
      %334 = vmatprep.mubr.f32.mxu0 0.0
      %335 = vmatmul.mubr.f32.gmra.mxu0 %v194
      %v336 = vpop.f32.mrf.mxu0
      %v337 = vadd.f32 0.0, %v336
      %v338 = vpop.f32.mrf.mxu0
      %339 = vmatprep.mubr.f32.mxu0 0.0
      %340 = vmatmul.mubr.f32.gmra.mxu0 %v195
      %v341 = vpop.f32.mrf.mxu0
      %v342 = vadd.f32 0.0, %v341
      %v343 = vpop.f32.mrf.mxu0
      %344 = vmatprep.mubr.f32.mxu0 0.0
      %345 = vmatmul.mubr.f32.gmra.mxu0 %v196
      %v346 = vpop.f32.mrf.mxu0
      %v347 = vadd.f32 0.0, %v346
      %v348 = vpop.f32.mrf.mxu0
      %349 = vmatprep.mubr.f32.mxu0 0.0
      %350 = vmatmul.mubr.f32.gmra.mxu0 %v197
      %v351 = vpop.f32.mrf.mxu0
      %v352 = vadd.f32 0.0, %v351
      %v353 = vpop.f32.mrf.mxu0
      %354 = vmatprep.mubr.f32.mxu0 0.0
      %355 = vmatmul.mubr.f32.gmra.mxu0 %v198
      %v356 = vpop.f32.mrf.mxu0
      %v357 = vadd.f32 0.0, %v356
      %v358 = vpop.f32.mrf.mxu0
      %359 = vdwg.mxu0
      %360 = vst [vmem:[%s181] sm:$0xff] %v282
      %361 = vst [vmem:[%s181 + $0x8] sm:$0xff] %v287
      %362 = vst [vmem:[%s181 + $0x10] sm:$0xff] %v292
      %363 = vst [vmem:[%s181 + $0x18] sm:$0xff] %v297
      %364 = vst [vmem:[%s181 + $0x20] sm:$0xff] %v302
      %365 = vst [vmem:[%s181 + $0x28] sm:$0xff] %v307
      %366 = vst [vmem:[%s181 + $0x30] sm:$0xff] %v312
      %367 = vst [vmem:[%s181 + $0x38] sm:$0xff] %v317
      %368 = vst [vmem:[%s181 + $0x40] sm:$0xff] %v322
      %369 = vst [vmem:[%s181 + $0x48] sm:$0xff] %v327
      %370 = vst [vmem:[%s181 + $0x50] sm:$0xff] %v332
      %371 = vst [vmem:[%s181 + $0x58] sm:$0xff] %v337
      %372 = vst [vmem:[%s181 + $0x60] sm:$0xff] %v342
      %373 = vst [vmem:[%s181 + $0x68] sm:$0xff] %v347
      %374 = vst [vmem:[%s181 + $0x70] sm:$0xff] %v352
      %375 = vst [vmem:[%s181 + $0x78] sm:$0xff] %v357
      %s376 = smul.u32 16, %s18
      %p377 = scmp.lt.s32.totalorder %s17, 1
      %s378 = scalar_select %p377, %s17, 1
      %p379 = scmp.lt.s32.totalorder %s376, 15
      %s380 = scalar_select %p379, %s376, 15
      %s381 = smul.addr %s378, 16
      %s382 = sadd.s32 %s380, %s381
      %s383 = smul.addr %s382, 8
      %s384 = scalar_lea.vmem %s2, %s383
      // Predicated region
      $region29: #{graph_convolution.2} parent=27 // pred_check
        %p385 = pneg %p94
      $region30: #{graph_convolution.2} parent=27 // pred_check_branch
        %387 = sbr.rel (%p385) target = $region32
      $region31: #{graph_convolution.2} parent=27 // pred_region
        %s388 = smul.u32 16, %s18
      $region32: #{graph_convolution.2} parent=27 // pred_fallthru
        _
    $region28: #{graph_convolution.2} parent=5 // pred_fallthru
      _
    %p389 = scmp.le.s32.totalorder 2, %s8
    // Predicated region
    $region33: #{graph_convolution.2} parent=5 // pred_check
      %p390 = pneg %p389
    $region34: #{graph_convolution.2} parent=5 // pred_check_branch
      %392 = sbr.rel (%p390) target = $region36
    $region35: #{graph_convolution.2} parent=5 // pred_region
      %s393 = ssub.s32 %s8, 2
      // Predicated region
      $region37: #{graph_convolution.2} parent=35 // pred_check
        %p394 = pneg %p100
      $region38: #{graph_convolution.2} parent=35 // pred_check_branch
        %396 = sbr.rel (%p394) target = $region40
      $region39: #{graph_convolution.2} parent=35 // pred_region
        %s397 = smul.u32 16, %s20
        %p398 = scmp.lt.s32.totalorder %s19, 1
        %s399 = scalar_select %p398, %s19, 1
        %p400 = scmp.lt.s32.totalorder %s397, 15
        %s401 = scalar_select %p400, %s397, 15
        %s402 = smul.addr %s399, 16
        %s403 = sadd.s32 %s401, %s402
        %s404 = smul.addr %s403, 8
        %s405 = scalar_lea.vmem %s2, %s404
      $region40: #{graph_convolution.2} parent=35 // pred_fallthru
        _
    $region36: #{graph_convolution.2} parent=5 // pred_fallthru
      _
  $region6: #{graph_convolution.2} parent=0 // loop_footer
    %s12 = sadd.s32 1, %s8
  $region7: #{graph_convolution.2} parent=0 // loop_footer_branch
    %7 = sbr.rel target = $region3
  $region8: #{graph_convolution.2} parent=0 // loop_exit
    _

// kernel: graph_convolution.3
$region0: #{graph_convolution.3}
  #allocation0 [shape = 'u32[]', space=smem, size = 0x4, offset = 0x4, fixed_abs, tag = 'smem constant byte address 0x4 - core index']
  #allocation1 [shape = 'u32[144,128]{1,0:T(1,128)}', space=vmem, size = 0x12000, scoped, tag = 'internal scratch']
  #allocation2 [shape = 'f32[128,128]{1,0:T(8,128)}', space=vmem, size = 0x10000, scoped, tag = 'scratch operand']
  %s0 = inlined_call_operand.vmem [shape: f32[2,128,128], index: 0, kind: input, shape index: {}]
  %s1 = inlined_call_operand.vmem [shape: f32[2,128,128], index: 1, kind: input, shape index: {}]
  %s2 = inlined_call_operand.vmem [shape: f32[1,128], index: 2, kind: input, shape index: {}]
  %s3 = inlined_call_operand.vmem [shape: f32[2,128,128], index: 3, kind: output, shape index: {}]
  %s4 = sld [smem:[#allocation0]]
  $region53: #{graph_convolution.3} parent=0
    _
  %s6 = ssub.s32 1, %s4
  %s7 = scalar_select 0, %s6, %s4
  loop: start=0, step=1, limit=4
  $region2: #{graph_convolution.3} parent=0 // loop_pre_header
    _
  $region3: #{graph_convolution.3} parent=0 // loop_header
    %s9 = sphi 0, %s13
    %p10 = scmp.ge.s32.totalorder %s9, 4
    %s16 = sphi 0, %s35
    %s17 = sphi 0, %s31
    %s18 = sphi 0, %s27
    %s19 = sphi 0, %s16
    %s20 = sphi 0, %s17
    %s21 = sphi 0, %s18
    %s22 = sphi 0, %s19
    %s23 = sphi 0, %s20
    %s24 = sphi 0, %s21
    %s42 = sphi 0, %s44
    %s45 = sphi 0, %s42
    %s46 = sphi 0, %s45
    %s62 = sphi 0, %s46
    %s68 = sphi 0, %s70
    %s71 = sphi 0, %s68
    %s72 = sphi 0, %s71
    %s88 = sphi 0, %s72
    %s92 = sphi 0, %s92
    %s94 = sphi 0, %s92
    %s95 = sphi 0, %s94
    %s109 = sphi 0, %s95
    %s117 = sphi 0, %s119
    %s120 = sphi 0, %s117
    %s121 = sphi 0, %s120
    %s137 = sphi 0, %s121
  $region4: #{graph_convolution.3} parent=0 // loop_header_branch
    %12 = sbr.rel (%p10) target = $region8
  $region5: #{graph_convolution.3} parent=0 // loop_body
    %s14 = ssub.s32 %s9, 1
    %s15 = ssub.s32 %s9, 2
    %s25 = sadd.s32 1, %s18
    %p26 = scmp.ge.s32.totalorder %s25, 1
    %s27 = scalar_select %p26, 0, %s25
    %s28 = sadd.s32 1, %s17
    %s29 = scalar_select %p26, %s28, %s17
    %p30 = scmp.ge.s32.totalorder %s29, 1
    %s31 = scalar_select %p30, 0, %s29
    %s32 = sadd.s32 1, %s16
    %s33 = scalar_select %p30, %s32, %s16
    %p34 = scmp.ge.s32.totalorder %s33, 2
    %s35 = scalar_select %p34, 0, %s33
    %s36 = ssub.s32 %s16, %s35
    %s37 = ssub.s32 %s17, %s31
    %s38 = sor.u32 %s36, %s37
    %s39 = ssub.s32 %s18, %s27
    %s40 = sor.u32 %s38, %s39
    %p41 = scmp.eq.s32.totalorder %s40, 0
    %s43 = sadd.s32 %s42, 1
    %s44 = scalar_select %p41, %s42, %s43
    %p47 = pneg %p41
    %p48 = scmp.eq.s32.totalorder %s9, 1
    %p49 = por %p47, %p48
    %p50 = scmp.ne.s32.totalorder %s42, %s45
    %p51 = scmp.eq.s32.totalorder %s9, 0
    %p52 = por %p50, %p51
    %p53 = scmp.ne.s32.totalorder %s42, %s45
    %p54 = scmp.eq.s32.totalorder %s14, 1
    %p55 = por %p53, %p54
    %p56 = scmp.ne.s32.totalorder %s45, %s46
    %p57 = scmp.eq.s32.totalorder %s14, 0
    %p58 = por %p56, %p57
    %p59 = scmp.ne.s32.totalorder %s45, %s46
    %p60 = scmp.eq.s32.totalorder %s15, 1
    %p61 = por %p59, %p60
    %p63 = scmp.ne.s32.totalorder %s46, %s62
    %p64 = scmp.eq.s32.totalorder %s15, 0
    %p65 = por %p63, %p64
    %s66 = ssub.s32 %s16, %s35
    %p67 = scmp.eq.s32.totalorder %s66, 0
    %s69 = sadd.s32 %s68, 1
    %s70 = scalar_select %p67, %s68, %s69
    %p73 = pneg %p67
    %p74 = scmp.eq.s32.totalorder %s9, 1
    %p75 = por %p73, %p74
    %p76 = scmp.ne.s32.totalorder %s68, %s71
    %p77 = scmp.eq.s32.totalorder %s9, 0
    %p78 = por %p76, %p77
    %p79 = scmp.ne.s32.totalorder %s68, %s71
    %p80 = scmp.eq.s32.totalorder %s14, 1
    %p81 = por %p79, %p80
    %p82 = scmp.ne.s32.totalorder %s71, %s72
    %p83 = scmp.eq.s32.totalorder %s14, 0
    %p84 = por %p82, %p83
    %p85 = scmp.ne.s32.totalorder %s71, %s72
    %p86 = scmp.eq.s32.totalorder %s15, 1
    %p87 = por %p85, %p86
    %p89 = scmp.ne.s32.totalorder %s72, %s88
    %p90 = scmp.eq.s32.totalorder %s15, 0
    %p91 = por %p89, %p90
    %s93 = sadd.s32 %s92, 1
    %p96 = scmp.eq.s32.totalorder %s9, 1
    %p97 = scmp.ne.s32.totalorder %s92, %s94
    %p98 = scmp.eq.s32.totalorder %s9, 0
    %p99 = por %p97, %p98
    %p100 = scmp.ne.s32.totalorder %s92, %s94
    %p101 = scmp.eq.s32.totalorder %s14, 1
    %p102 = por %p100, %p101
    %p103 = scmp.ne.s32.totalorder %s94, %s95
    %p104 = scmp.eq.s32.totalorder %s14, 0
    %p105 = por %p103, %p104
    %p106 = scmp.ne.s32.totalorder %s94, %s95
    %p107 = scmp.eq.s32.totalorder %s15, 1
    %p108 = por %p106, %p107
    %p110 = scmp.ne.s32.totalorder %s95, %s109
    %p111 = scmp.eq.s32.totalorder %s15, 0
    %p112 = por %p110, %p111
    %s113 = ssub.s32 %s16, %s35
    %s114 = ssub.s32 %s17, %s31
    %s115 = sor.u32 %s113, %s114
    %p116 = scmp.eq.s32.totalorder %s115, 0
    %s118 = sadd.s32 %s117, 1
    %s119 = scalar_select %p116, %s117, %s118
    %p122 = pneg %p116
    %p123 = scmp.eq.s32.totalorder %s9, 1
    %p124 = por %p122, %p123
    %p125 = scmp.ne.s32.totalorder %s117, %s120
    %p126 = scmp.eq.s32.totalorder %s9, 0
    %p127 = por %p125, %p126
    %p128 = scmp.ne.s32.totalorder %s117, %s120
    %p129 = scmp.eq.s32.totalorder %s14, 1
    %p130 = por %p128, %p129
    %p131 = scmp.ne.s32.totalorder %s120, %s121
    %p132 = scmp.eq.s32.totalorder %s14, 0
    %p133 = por %p131, %p132
    %p134 = scmp.ne.s32.totalorder %s120, %s121
    %p135 = scmp.eq.s32.totalorder %s15, 1
    %p136 = por %p134, %p135
    %p138 = scmp.ne.s32.totalorder %s121, %s137
    %p139 = scmp.eq.s32.totalorder %s15, 0
    %p140 = por %p138, %p139
    %p141 = scmp.le.s32.totalorder 1, %s9
    %p142 = scmp.lt.s32.totalorder %s9, 3
    %p143 = pnand %p141, %p142
    %p144 = pneg %p143
    // Predicated region
    $region9: #{graph_convolution.3} parent=5 // pred_check
      _
    $region10: #{graph_convolution.3} parent=5 // pred_check_branch
      %146 = sbr.rel (%p143) target = $region12
    $region11: #{graph_convolution.3} parent=5 // pred_region
      %s147 = ssub.s32 %s9, 1
      // Predicated region
      $region13: #{graph_convolution.3} parent=11 // pred_check
        %p148 = pneg %p105
      $region14: #{graph_convolution.3} parent=11 // pred_check_branch
        %150 = sbr.rel (%p148) target = $region16
      $region15: #{graph_convolution.3} parent=11 // pred_region
        _
      $region16: #{graph_convolution.3} parent=11 // pred_fallthru
        _
    $region12: #{graph_convolution.3} parent=5 // pred_fallthru
      _
    %p151 = scmp.lt.s32.totalorder %s9, 2
    // Predicated region
    $region17: #{graph_convolution.3} parent=5 // pred_check
      %p152 = pneg %p151
    $region18: #{graph_convolution.3} parent=5 // pred_check_branch
      %154 = sbr.rel (%p152) target = $region20
    $region19: #{graph_convolution.3} parent=5 // pred_region
      // Predicated region
      $region21: #{graph_convolution.3} parent=19 // pred_check
        %p155 = pneg %p52
      $region22: #{graph_convolution.3} parent=19 // pred_check_branch
        %157 = sbr.rel (%p155) target = $region24
      $region23: #{graph_convolution.3} parent=19 // pred_region
        %s158 = smul.u32 16, %s17
        %p159 = scmp.lt.s32.totalorder %s16, 1
        %s160 = scalar_select %p159, %s16, 1
        %p161 = scmp.lt.s32.totalorder %s158, 15
        %s162 = scalar_select %p161, %s158, 15
        %p163 = scmp.lt.s32.totalorder %s18, 0
        %s164 = scalar_select %p163, %s18, 0
        %s165 = sadd.s32 %s164, %s162
        %s166 = smul.addr %s160, 16
        %s167 = sadd.s32 %s165, %s166
        %s168 = smul.addr %s167, 8
        %s169 = scalar_lea.vmem %s0, %s168
        %s170 = smul.u32 16, %s17
      $region24: #{graph_convolution.3} parent=19 // pred_fallthru
        _
      // Predicated region
      $region25: #{graph_convolution.3} parent=19 // pred_check
        %p171 = pneg %p78
      $region26: #{graph_convolution.3} parent=19 // pred_check_branch
        %173 = sbr.rel (%p171) target = $region28
      $region27: #{graph_convolution.3} parent=19 // pred_region
        %p174 = scmp.lt.s32.totalorder %s16, 1
        %s175 = scalar_select %p174, %s16, 1
        %s176 = smul.addr %s175, 16
        %s177 = smul.addr %s176, 8
        %s178 = scalar_lea.vmem %s1, %s177
      $region28: #{graph_convolution.3} parent=19 // pred_fallthru
        _
    $region20: #{graph_convolution.3} parent=5 // pred_fallthru
      _
    %p179 = scmp.le.s32.totalorder 1, %s9
    %p180 = scmp.lt.s32.totalorder %s9, 3
    %p181 = pnand %p179, %p180
    %p182 = pneg %p181
    // Predicated region
    $region29: #{graph_convolution.3} parent=5 // pred_check
      _
    $region30: #{graph_convolution.3} parent=5 // pred_check_branch
      %184 = sbr.rel (%p181) target = $region32
    $region31: #{graph_convolution.3} parent=5 // pred_region
      %s185 = ssub.s32 %s9, 1
      %s186 = smul.u32 16, %s20
      %p187 = scmp.lt.s32.totalorder %s19, 1
      %s188 = scalar_select %p187, %s19, 1
      %p189 = scmp.lt.s32.totalorder %s186, 15
      %s190 = scalar_select %p189, %s186, 15
      %p191 = scmp.lt.s32.totalorder %s21, 0
      %s192 = scalar_select %p191, %s21, 0
      %s193 = sadd.s32 %s192, %s190
      %s194 = smul.addr %s188, 16
      %s195 = sadd.s32 %s193, %s194
      %s196 = smul.addr %s195, 8
      %s197 = scalar_lea.vmem %s0, %s196
      %p198 = pneg %p58
      %p199 = pneg %p55
      %p200 = scmp.lt.s32.totalorder %s19, 1
      %s201 = scalar_select %p200, %s19, 1
      %s202 = smul.addr %s201, 16
      %s203 = smul.addr %s202, 8
      %s204 = scalar_lea.vmem %s1, %s203
      %p205 = pneg %p84
      %p206 = pneg %p81
      %p207 = pneg %p105
      %p208 = pneg %p102
      %p209 = pneg %p133
      %p210 = pneg %p130
      %s211 = smul.u32 16, %s20
      %p212 = scmp.lt.s32.totalorder %s19, 1
      %s213 = scalar_select %p212, %s19, 1
      %p214 = scmp.lt.s32.totalorder %s211, 15
      %s215 = scalar_select %p214, %s211, 15
      %s216 = smul.addr %s213, 16
      %s217 = sadd.s32 %s215, %s216
      %s218 = smul.addr %s217, 8
      %s219 = scalar_lea.vmem %s3, %s218
      %s220 = smul.u32 16, %s20
      %p221 = scmp.lt.s32.totalorder %s19, 1
      %s222 = scalar_select %p221, %s19, 1
      %p223 = scmp.lt.s32.totalorder %s220, 15
      %s224 = scalar_select %p223, %s220, 15
      %p225 = scmp.lt.s32.totalorder %s21, 0
      %s226 = scalar_select %p225, %s21, 0
      %s227 = sadd.s32 %s226, %s224
      %s228 = smul.addr %s222, 16
      %s229 = sadd.s32 %s227, %s228
      %s230 = smul.addr %s229, 8
      %s231 = scalar_lea.vmem %s0, %s230
      %s232 = smul.u32 16, %s20
      %p233 = scmp.lt.s32.totalorder %s19, 1
      %s234 = scalar_select %p233, %s19, 1
      %s235 = smul.addr %s234, 16
      %s236 = smul.addr %s235, 8
      %s237 = scalar_lea.vmem %s1, %s236
      %s238 = smul.u32 16, %s20
      %p239 = scmp.lt.s32.totalorder %s19, 1
      %s240 = scalar_select %p239, %s19, 1
      %p241 = scmp.lt.s32.totalorder %s238, 15
      %s242 = scalar_select %p241, %s238, 15
      %s243 = smul.addr %s240, 16
      %s244 = sadd.s32 %s242, %s243
      %s245 = smul.addr %s244, 8
      %s246 = scalar_lea.vmem %s3, %s245
      %s247 = smul.u32 16, %s20
      %p248 = scmp.eq.s32.totalorder %s21, 0
      // Predicated region
      $region33: #{graph_convolution.3} parent=31 // pred_check
        %p249 = pneg %p248
      $region34: #{graph_convolution.3} parent=31 // pred_check_branch
        %251 = sbr.rel (%p249) target = $region36
      $region35: #{graph_convolution.3} parent=31 // pred_region
        %252 = vst [vmem:[#allocation2] sm:$0xff] 0.0
        %253 = vst [vmem:[#allocation2 + $0x8] sm:$0xff] 0.0
        %254 = vst [vmem:[#allocation2 + $0x10] sm:$0xff] 0.0
        %255 = vst [vmem:[#allocation2 + $0x18] sm:$0xff] 0.0
        %256 = vst [vmem:[#allocation2 + $0x20] sm:$0xff] 0.0
        %257 = vst [vmem:[#allocation2 + $0x28] sm:$0xff] 0.0
        %258 = vst [vmem:[#allocation2 + $0x30] sm:$0xff] 0.0
        %259 = vst [vmem:[#allocation2 + $0x38] sm:$0xff] 0.0
        %260 = vst [vmem:[#allocation2 + $0x40] sm:$0xff] 0.0
        %261 = vst [vmem:[#allocation2 + $0x48] sm:$0xff] 0.0
        %262 = vst [vmem:[#allocation2 + $0x50] sm:$0xff] 0.0
        %263 = vst [vmem:[#allocation2 + $0x58] sm:$0xff] 0.0
        %264 = vst [vmem:[#allocation2 + $0x60] sm:$0xff] 0.0
        %265 = vst [vmem:[#allocation2 + $0x68] sm:$0xff] 0.0
        %266 = vst [vmem:[#allocation2 + $0x70] sm:$0xff] 0.0
        %267 = vst [vmem:[#allocation2 + $0x78] sm:$0xff] 0.0
      $region36: #{graph_convolution.3} parent=31 // pred_fallthru
        _
      %s268 = smul.u32 %s21, 128
      %s269 = scalar_lea.vmem %s237, %s268
      %v270 = vld [vmem:[%s269] sm:$0xff]
      %v271 = vld [vmem:[%s269 + $0x8] sm:$0xff]
      %v272 = vld [vmem:[%s269 + $0x10] sm:$0xff]
      %v273 = vld [vmem:[%s269 + $0x18] sm:$0xff]
      %v274 = vld [vmem:[%s269 + $0x20] sm:$0xff]
      %v275 = vld [vmem:[%s269 + $0x28] sm:$0xff]
      %v276 = vld [vmem:[%s269 + $0x30] sm:$0xff]
      %v277 = vld [vmem:[%s269 + $0x38] sm:$0xff]
      %v278 = vld [vmem:[%s269 + $0x40] sm:$0xff]
      %v279 = vld [vmem:[%s269 + $0x48] sm:$0xff]
      %v280 = vld [vmem:[%s269 + $0x50] sm:$0xff]
      %v281 = vld [vmem:[%s269 + $0x58] sm:$0xff]
      %v282 = vld [vmem:[%s269 + $0x60] sm:$0xff]
      %v283 = vld [vmem:[%s269 + $0x68] sm:$0xff]
      %v284 = vld [vmem:[%s269 + $0x70] sm:$0xff]
      %v285 = vld [vmem:[%s269 + $0x78] sm:$0xff]
      %v286 = vld [vmem:[#allocation2] sm:$0xff]
      %v287 = vld [vmem:[#allocation2 + $0x8] sm:$0xff]
      %v288 = vld [vmem:[#allocation2 + $0x10] sm:$0xff]
      %v289 = vld [vmem:[#allocation2 + $0x18] sm:$0xff]
      %v290 = vld [vmem:[#allocation2 + $0x20] sm:$0xff]
      %v291 = vld [vmem:[#allocation2 + $0x28] sm:$0xff]
      %v292 = vld [vmem:[#allocation2 + $0x30] sm:$0xff]
      %v293 = vld [vmem:[#allocation2 + $0x38] sm:$0xff]
      %v294 = vld [vmem:[#allocation2 + $0x40] sm:$0xff]
      %v295 = vld [vmem:[#allocation2 + $0x48] sm:$0xff]
      %v296 = vld [vmem:[#allocation2 + $0x50] sm:$0xff]
      %v297 = vld [vmem:[#allocation2 + $0x58] sm:$0xff]
      %v298 = vld [vmem:[#allocation2 + $0x60] sm:$0xff]
      %v299 = vld [vmem:[#allocation2 + $0x68] sm:$0xff]
      %v300 = vld [vmem:[#allocation2 + $0x70] sm:$0xff]
      %v301 = vld [vmem:[#allocation2 + $0x78] sm:$0xff]
      %v302 = vld [vmem:[%s231] sm:$0xff]
      %v303 = vld [vmem:[%s231 + $0x8] sm:$0xff]
      %v304 = vld [vmem:[%s231 + $0x10] sm:$0xff]
      %v305 = vld [vmem:[%s231 + $0x18] sm:$0xff]
      %v306 = vld [vmem:[%s231 + $0x20] sm:$0xff]
      %v307 = vld [vmem:[%s231 + $0x28] sm:$0xff]
      %v308 = vld [vmem:[%s231 + $0x30] sm:$0xff]
      %v309 = vld [vmem:[%s231 + $0x38] sm:$0xff]
      %v310 = vld [vmem:[%s231 + $0x40] sm:$0xff]
      %v311 = vld [vmem:[%s231 + $0x48] sm:$0xff]
      %v312 = vld [vmem:[%s231 + $0x50] sm:$0xff]
      %v313 = vld [vmem:[%s231 + $0x58] sm:$0xff]
      %v314 = vld [vmem:[%s231 + $0x60] sm:$0xff]
      %v315 = vld [vmem:[%s231 + $0x68] sm:$0xff]
      %v316 = vld [vmem:[%s231 + $0x70] sm:$0xff]
      %v317 = vld [vmem:[%s231 + $0x78] sm:$0xff]
      %318 = vmatprep.subr.mxu0 0.0
      %319 = vmatpush1.msra.mxu0 %v285
      %320 = vmatprep.subr.mxu0 0.0
      %321 = vmatpush1.msra.mxu0 %v284
      %322 = vmatprep.subr.mxu0 0.0
      %323 = vmatpush1.msra.mxu0 %v283
      %324 = vmatprep.subr.mxu0 0.0
      %325 = vmatpush1.msra.mxu0 %v282
      %326 = vmatprep.subr.mxu0 0.0
      %327 = vmatpush1.msra.mxu0 %v281
      %328 = vmatprep.subr.mxu0 0.0
      %329 = vmatpush1.msra.mxu0 %v280
      %330 = vmatprep.subr.mxu0 0.0
      %331 = vmatpush1.msra.mxu0 %v279
      %332 = vmatprep.subr.mxu0 0.0
      %333 = vmatpush1.msra.mxu0 %v278
      %334 = vmatprep.subr.mxu0 0.0
      %335 = vmatpush1.msra.mxu0 %v277
      %336 = vmatprep.subr.mxu0 0.0
      %337 = vmatpush1.msra.mxu0 %v276
      %338 = vmatprep.subr.mxu0 0.0
      %339 = vmatpush1.msra.mxu0 %v275
      %340 = vmatprep.subr.mxu0 0.0
      %341 = vmatpush1.msra.mxu0 %v274
      %342 = vmatprep.subr.mxu0 0.0
      %343 = vmatpush1.msra.mxu0 %v273
      %344 = vmatprep.subr.mxu0 0.0
      %345 = vmatpush1.msra.mxu0 %v272
      %346 = vmatprep.subr.mxu0 0.0
      %347 = vmatpush1.msra.mxu0 %v271
      %348 = vmatprep.subr.mxu0 0.0
      %349 = vmatpush1.msra.mxu0 %v270
      %350 = vmatprep.subr.mxu0 0.0
      %351 = vmatpush2.msra.mxu0 0.0
      %352 = vmatprep.subr.mxu0 0.0
      %353 = vmatpush2.msra.mxu0 0.0
      %354 = vmatprep.subr.mxu0 0.0
      %355 = vmatpush2.msra.mxu0 0.0
      %356 = vmatprep.subr.mxu0 0.0
      %357 = vmatpush2.msra.mxu0 0.0
      %358 = vmatprep.subr.mxu0 0.0
      %359 = vmatpush2.msra.mxu0 0.0
      %360 = vmatprep.subr.mxu0 0.0
      %361 = vmatpush2.msra.mxu0 0.0
      %362 = vmatprep.subr.mxu0 0.0
      %363 = vmatpush2.msra.mxu0 0.0
      %364 = vmatprep.subr.mxu0 0.0
      %365 = vmatpush2.msra.mxu0 0.0
      %366 = vmatprep.subr.mxu0 0.0
      %367 = vmatpush2.msra.mxu0 0.0
      %368 = vmatprep.subr.mxu0 0.0
      %369 = vmatpush2.msra.mxu0 0.0
      %370 = vmatprep.subr.mxu0 0.0
      %371 = vmatpush2.msra.mxu0 0.0
      %372 = vmatprep.subr.mxu0 0.0
      %373 = vmatpush2.msra.mxu0 0.0
      %374 = vmatprep.subr.mxu0 0.0
      %375 = vmatpush2.msra.mxu0 0.0
      %376 = vmatprep.subr.mxu0 0.0
      %377 = vmatpush2.msra.mxu0 0.0
      %378 = vmatprep.subr.mxu0 0.0
      %379 = vmatpush2.msra.mxu0 0.0
      %380 = vmatprep.subr.mxu0 0.0
      %381 = vmatpush2.msra.mxu0 0.0
      %382 = vmatprep.mubr.f32.mxu0 0.0
      %383 = vmatmul.mubr.f32.gmra.mxu0 %v302
      %v384 = vpop.f32.mrf.mxu0
      %v385 = vadd.f32 0.0, %v384
      %v386 = vpop.f32.mrf.mxu0
      %387 = vmatprep.mubr.f32.mxu0 0.0
      %388 = vmatmul.mubr.f32.gmra.mxu0 %v303
      %v389 = vpop.f32.mrf.mxu0
      %v390 = vadd.f32 0.0, %v389
      %v391 = vpop.f32.mrf.mxu0
      %392 = vmatprep.mubr.f32.mxu0 0.0
      %393 = vmatmul.mubr.f32.gmra.mxu0 %v304
      %v394 = vpop.f32.mrf.mxu0
      %v395 = vadd.f32 0.0, %v394
      %v396 = vpop.f32.mrf.mxu0
      %397 = vmatprep.mubr.f32.mxu0 0.0
      %398 = vmatmul.mubr.f32.gmra.mxu0 %v305
      %v399 = vpop.f32.mrf.mxu0
      %v400 = vadd.f32 0.0, %v399
      %v401 = vpop.f32.mrf.mxu0
      %402 = vmatprep.mubr.f32.mxu0 0.0
      %403 = vmatmul.mubr.f32.gmra.mxu0 %v306
      %v404 = vpop.f32.mrf.mxu0
      %v405 = vadd.f32 0.0, %v404
      %v406 = vpop.f32.mrf.mxu0
      %407 = vmatprep.mubr.f32.mxu0 0.0
      %408 = vmatmul.mubr.f32.gmra.mxu0 %v307
      %v409 = vpop.f32.mrf.mxu0
      %v410 = vadd.f32 0.0, %v409
      %v411 = vpop.f32.mrf.mxu0
      %412 = vmatprep.mubr.f32.mxu0 0.0
      %413 = vmatmul.mubr.f32.gmra.mxu0 %v308
      %v414 = vpop.f32.mrf.mxu0
      %v415 = vadd.f32 0.0, %v414
      %v416 = vpop.f32.mrf.mxu0
      %417 = vmatprep.mubr.f32.mxu0 0.0
      %418 = vmatmul.mubr.f32.gmra.mxu0 %v309
      %v419 = vpop.f32.mrf.mxu0
      %v420 = vadd.f32 0.0, %v419
      %v421 = vpop.f32.mrf.mxu0
      %422 = vmatprep.mubr.f32.mxu0 0.0
      %423 = vmatmul.mubr.f32.gmra.mxu0 %v310
      %v424 = vpop.f32.mrf.mxu0
      %v425 = vadd.f32 0.0, %v424
      %v426 = vpop.f32.mrf.mxu0
      %427 = vmatprep.mubr.f32.mxu0 0.0
      %428 = vmatmul.mubr.f32.gmra.mxu0 %v311
      %v429 = vpop.f32.mrf.mxu0
      %v430 = vadd.f32 0.0, %v429
      %v431 = vpop.f32.mrf.mxu0
      %432 = vmatprep.mubr.f32.mxu0 0.0
      %433 = vmatmul.mubr.f32.gmra.mxu0 %v312
      %v434 = vpop.f32.mrf.mxu0
      %v435 = vadd.f32 0.0, %v434
      %v436 = vpop.f32.mrf.mxu0
      %437 = vmatprep.mubr.f32.mxu0 0.0
      %438 = vmatmul.mubr.f32.gmra.mxu0 %v313
      %v439 = vpop.f32.mrf.mxu0
      %v440 = vadd.f32 0.0, %v439
      %v441 = vpop.f32.mrf.mxu0
      %442 = vmatprep.mubr.f32.mxu0 0.0
      %443 = vmatmul.mubr.f32.gmra.mxu0 %v314
      %v444 = vpop.f32.mrf.mxu0
      %v445 = vadd.f32 0.0, %v444
      %v446 = vpop.f32.mrf.mxu0
      %447 = vmatprep.mubr.f32.mxu0 0.0
      %448 = vmatmul.mubr.f32.gmra.mxu0 %v315
      %v449 = vpop.f32.mrf.mxu0
      %v450 = vadd.f32 0.0, %v449
      %v451 = vpop.f32.mrf.mxu0
      %452 = vmatprep.mubr.f32.mxu0 0.0
      %453 = vmatmul.mubr.f32.gmra.mxu0 %v316
      %v454 = vpop.f32.mrf.mxu0
      %v455 = vadd.f32 0.0, %v454
      %v456 = vpop.f32.mrf.mxu0
      %457 = vmatprep.mubr.f32.mxu0 0.0
      %458 = vmatmul.mubr.f32.gmra.mxu0 %v317
      %v459 = vpop.f32.mrf.mxu0
      %v460 = vadd.f32 0.0, %v459
      %v461 = vpop.f32.mrf.mxu0
      %462 = vdwg.mxu0
      %v463 = vadd.f32 %v286, %v385
      %v464 = vadd.f32 %v287, %v390
      %v465 = vadd.f32 %v288, %v395
      %v466 = vadd.f32 %v289, %v400
      %v467 = vadd.f32 %v290, %v405
      %v468 = vadd.f32 %v291, %v410
      %v469 = vadd.f32 %v292, %v415
      %v470 = vadd.f32 %v293, %v420
      %v471 = vadd.f32 %v294, %v425
      %v472 = vadd.f32 %v295, %v430
      %v473 = vadd.f32 %v296, %v435
      %v474 = vadd.f32 %v297, %v440
      %v475 = vadd.f32 %v298, %v445
      %v476 = vadd.f32 %v299, %v450
      %v477 = vadd.f32 %v300, %v455
      %v478 = vadd.f32 %v301, %v460
      %479 = vst [vmem:[#allocation2] sm:$0xff] %v463
      %480 = vst [vmem:[#allocation2 + $0x8] sm:$0xff] %v464
      %481 = vst [vmem:[#allocation2 + $0x10] sm:$0xff] %v465
      %482 = vst [vmem:[#allocation2 + $0x18] sm:$0xff] %v466
      %483 = vst [vmem:[#allocation2 + $0x20] sm:$0xff] %v467
      %484 = vst [vmem:[#allocation2 + $0x28] sm:$0xff] %v468
      %485 = vst [vmem:[#allocation2 + $0x30] sm:$0xff] %v469
      %486 = vst [vmem:[#allocation2 + $0x38] sm:$0xff] %v470
      %487 = vst [vmem:[#allocation2 + $0x40] sm:$0xff] %v471
      %488 = vst [vmem:[#allocation2 + $0x48] sm:$0xff] %v472
      %489 = vst [vmem:[#allocation2 + $0x50] sm:$0xff] %v473
      %490 = vst [vmem:[#allocation2 + $0x58] sm:$0xff] %v474
      %491 = vst [vmem:[#allocation2 + $0x60] sm:$0xff] %v475
      %492 = vst [vmem:[#allocation2 + $0x68] sm:$0xff] %v476
      %493 = vst [vmem:[#allocation2 + $0x70] sm:$0xff] %v477
      %494 = vst [vmem:[#allocation2 + $0x78] sm:$0xff] %v478
      // Predicated region
      $region37: #{graph_convolution.3} parent=31 // pred_check
        %p495 = pneg %p248
      $region38: #{graph_convolution.3} parent=31 // pred_check_branch
        %497 = sbr.rel (%p495) target = $region40
      $region39: #{graph_convolution.3} parent=31 // pred_region
        %v498 = vld [vmem:[#allocation2] sm:$0xff]
        %v499 = vld [vmem:[#allocation2 + $0x8] sm:$0xff]
        %v500 = vld [vmem:[#allocation2 + $0x10] sm:$0xff]
        %v501 = vld [vmem:[#allocation2 + $0x18] sm:$0xff]
        %v502 = vld [vmem:[#allocation2 + $0x20] sm:$0xff]
        %v503 = vld [vmem:[#allocation2 + $0x28] sm:$0xff]
        %v504 = vld [vmem:[#allocation2 + $0x30] sm:$0xff]
        %v505 = vld [vmem:[#allocation2 + $0x38] sm:$0xff]
        %v506 = vld [vmem:[#allocation2 + $0x40] sm:$0xff]
        %v507 = vld [vmem:[#allocation2 + $0x48] sm:$0xff]
        %v508 = vld [vmem:[#allocation2 + $0x50] sm:$0xff]
        %v509 = vld [vmem:[#allocation2 + $0x58] sm:$0xff]
        %v510 = vld [vmem:[#allocation2 + $0x60] sm:$0xff]
        %v511 = vld [vmem:[#allocation2 + $0x68] sm:$0xff]
        %v512 = vld [vmem:[#allocation2 + $0x70] sm:$0xff]
        %v513 = vld [vmem:[#allocation2 + $0x78] sm:$0xff]
        %v514 = vld [vmem:[%s2] sm:$0x1]
        %v516 = vlaneseq
        %v517 = vshrl.u32 %v516, 7
        %v518 = vsub.s32 0, %v517
        %v519 = vrot.slane %v514, %v518
        %v521 = vadd.f32 %v498, %v519
        %v522 = vadd.f32 %v499, %v519
        %v523 = vadd.f32 %v500, %v519
        %v524 = vadd.f32 %v501, %v519
        %v525 = vadd.f32 %v502, %v519
        %v526 = vadd.f32 %v503, %v519
        %v527 = vadd.f32 %v504, %v519
        %v528 = vadd.f32 %v505, %v519
        %v529 = vadd.f32 %v506, %v519
        %v530 = vadd.f32 %v507, %v519
        %v531 = vadd.f32 %v508, %v519
        %v532 = vadd.f32 %v509, %v519
        %v533 = vadd.f32 %v510, %v519
        %v534 = vadd.f32 %v511, %v519
        %v535 = vadd.f32 %v512, %v519
        %v536 = vadd.f32 %v513, %v519
        %537 = vst [vmem:[%s246] sm:$0xff] %v521
        %538 = vst [vmem:[%s246 + $0x8] sm:$0xff] %v522
        %539 = vst [vmem:[%s246 + $0x10] sm:$0xff] %v523
        %540 = vst [vmem:[%s246 + $0x18] sm:$0xff] %v524
        %541 = vst [vmem:[%s246 + $0x20] sm:$0xff] %v525
        %542 = vst [vmem:[%s246 + $0x28] sm:$0xff] %v526
        %543 = vst [vmem:[%s246 + $0x30] sm:$0xff] %v527
        %544 = vst [vmem:[%s246 + $0x38] sm:$0xff] %v528
        %545 = vst [vmem:[%s246 + $0x40] sm:$0xff] %v529
        %546 = vst [vmem:[%s246 + $0x48] sm:$0xff] %v530
        %547 = vst [vmem:[%s246 + $0x50] sm:$0xff] %v531
        %548 = vst [vmem:[%s246 + $0x58] sm:$0xff] %v532
        %549 = vst [vmem:[%s246 + $0x60] sm:$0xff] %v533
        %550 = vst [vmem:[%s246 + $0x68] sm:$0xff] %v534
        %551 = vst [vmem:[%s246 + $0x70] sm:$0xff] %v535
        %552 = vst [vmem:[%s246 + $0x78] sm:$0xff] %v536
      $region40: #{graph_convolution.3} parent=31 // pred_fallthru
        _
      %s553 = smul.u32 16, %s20
      %p554 = scmp.lt.s32.totalorder %s19, 1
      %s555 = scalar_select %p554, %s19, 1
      %p556 = scmp.lt.s32.totalorder %s553, 15
      %s557 = scalar_select %p556, %s553, 15
      %s558 = smul.addr %s555, 16
      %s559 = sadd.s32 %s557, %s558
      %s560 = smul.addr %s559, 8
      %s561 = scalar_lea.vmem %s3, %s560
      // Predicated region
      $region41: #{graph_convolution.3} parent=31 // pred_check
        %p562 = pneg %p130
      $region42: #{graph_convolution.3} parent=31 // pred_check_branch
        %564 = sbr.rel (%p562) target = $region44
      $region43: #{graph_convolution.3} parent=31 // pred_region
        %s565 = smul.u32 16, %s20
      $region44: #{graph_convolution.3} parent=31 // pred_fallthru
        _
    $region32: #{graph_convolution.3} parent=5 // pred_fallthru
      _
    %p566 = scmp.le.s32.totalorder 2, %s9
    // Predicated region
    $region45: #{graph_convolution.3} parent=5 // pred_check
      %p567 = pneg %p566
    $region46: #{graph_convolution.3} parent=5 // pred_check_branch
      %569 = sbr.rel (%p567) target = $region48
    $region47: #{graph_convolution.3} parent=5 // pred_region
      %s570 = ssub.s32 %s9, 2
      // Predicated region
      $region49: #{graph_convolution.3} parent=47 // pred_check
        %p571 = pneg %p136
      $region50: #{graph_convolution.3} parent=47 // pred_check_branch
        %573 = sbr.rel (%p571) target = $region52
      $region51: #{graph_convolution.3} parent=47 // pred_region
        %s574 = smul.u32 16, %s23
        %p575 = scmp.lt.s32.totalorder %s22, 1
        %s576 = scalar_select %p575, %s22, 1
        %p577 = scmp.lt.s32.totalorder %s574, 15
        %s578 = scalar_select %p577, %s574, 15
        %s579 = smul.addr %s576, 16
        %s580 = sadd.s32 %s578, %s579
        %s581 = smul.addr %s580, 8
        %s582 = scalar_lea.vmem %s3, %s581
      $region52: #{graph_convolution.3} parent=47 // pred_fallthru
        _
    $region48: #{graph_convolution.3} parent=5 // pred_fallthru
      _
  $region6: #{graph_convolution.3} parent=0 // loop_footer
    %s13 = sadd.s32 1, %s9
  $region7: #{graph_convolution.3} parent=0 // loop_footer_branch
    %8 = sbr.rel target = $region3
  $region8: #{graph_convolution.3} parent=0 // loop_exit
    _

</llo_original>
